<compile_context>
chip_gen: v6e
topology: v6e:2x2x1
jax: 0.10.0
libtpu: 0.0.40
codegen_flags: <defaults>
</compile_context>

<pallas_src>
import jax
import jax.numpy as jnp
from jax.experimental import pallas as pl
from jax.experimental.pallas import tpu as pltpu


_LANE_PAD = 128  # lane-dense output width (>= output_seq_length)


# ----------------------------- packed-slab layout ----------------------------
def _slab_layout(node_features, cell):
    """Row offsets of every constant operand inside the packed (rows, 128) bf16 slab."""
    F, H = node_features, cell
    blocks = [("w1", F), ("w2", H), ("wl1", 2 * H), ("wl2", H), ("wlin", 2 * H + F),
              ("b1", 1), ("s1", 1), ("t1", 1), ("b2", 1),
              ("bl1", 1), ("bl2", 1), ("blin", 1)]
    off, r = {}, 0
    for name, rows in blocks:
        if rows > 1:                       # keep matmul weight blocks sublane-aligned
            r = (r + 7) // 8 * 8
        off[name] = r
        r += rows
    total_rows = (r + 7) // 8 * 8
    return off, total_rows


# ----------------------------- Pallas kernel --------------------------------
def _make_kernel(node_features, cell, off):
    F, H = node_features, cell
    H3 = 3 * H
    f32, bf16 = jnp.float32, jnp.bfloat16

    def kernel(a_ref, x_ref, slab_ref, out_ref):
        A = a_ref[...]                                   # (N, N) bf16, VMEM-resident
        X = x_ref[...]                                   # (N, F) bf16, streamed per step

        def vrow(name, cols):                            # (1, cols) f32 broadcast row
            r = off[name]
            return slab_ref[r:r + 1, :cols].astype(f32)

        def wblk(name, r0, rows, cols):                  # bf16 weight sub-block (static view)
            r = off[name] + r0
            return slab_ref[r:r + rows, :cols]

        # --- GCNConv 1 -> ReLU -> BatchNorm1d (eval, folded scale/shift); (A@X)@W1 order ---
        ax = jnp.dot(A, X, preferred_element_type=f32)
        g1 = jnp.dot(ax.astype(bf16), wblk("w1", 0, F, H),
                     preferred_element_type=f32) + vrow("b1", H)
        g1 = jnp.maximum(g1, 0.0)
        g1 = g1 * vrow("s1", H) + vrow("t1", H)
        # TODO(synk): F.dropout(p=0.2) is identity in eval mode; training-mode RNG mask not implemented.
        g1b = g1.astype(bf16)

        # --- GCNConv 2 -> ReLU.  Its BatchNorm (eval) is folded into the LSTM-1 weights ---
        xw2 = jnp.dot(g1b, wblk("w2", 0, H, H), preferred_element_type=f32)
        g2 = jnp.dot(A, xw2.astype(bf16), preferred_element_type=f32) + vrow("b2", H)
        g2b = jnp.maximum(g2, 0.0).astype(bf16)

        # --- LSTM layer 1: single step from zero state.  Gates (i|g|o) merged into one
        #     (N, 3H) pre-activation; forget gate dropped since c0 == 0; BN2 folded in ---
        gates1 = (jnp.dot(g1b, wblk("wl1", 0, H, H3), preferred_element_type=f32)
                  + jnp.dot(g2b, wblk("wl1", H, H, H3), preferred_element_type=f32)
                  + vrow("bl1", H3))
        i1 = jax.nn.sigmoid(gates1[:, :H])
        c1 = i1 * jnp.tanh(gates1[:, H:2 * H])
        o1 = jax.nn.sigmoid(gates1[:, 2 * H:])
        h1 = o1 * jnp.tanh(c1)                           # == H_1[0]

        # --- LSTM layer 2: single step on h1, zero initial state; one merged matmul ---
        gates2 = jnp.dot(h1.astype(bf16), wblk("wl2", 0, H, H3),
                         preferred_element_type=f32) + vrow("bl2", H3)
        i2 = jax.nn.sigmoid(gates2[:, :H])
        c2 = i2 * jnp.tanh(gates2[:, H:2 * H])
        o2 = jax.nn.sigmoid(gates2[:, 2 * H:])
        h2 = o2 * jnp.tanh(c2)                           # == H_2[0]

        # --- head: relu(cat([h1, h2, X])) @ W_lin + b_lin as split matmuls into a
        #     lane-dense (N, 128) slab (padded output columns are zero) ---
        out = jnp.dot(jnp.maximum(h1, 0.0).astype(bf16), wblk("wlin", 0, H, _LANE_PAD),
                      preferred_element_type=f32)
        out = out + jnp.dot(jnp.maximum(h2, 0.0).astype(bf16),
                            wblk("wlin", H, H, _LANE_PAD), preferred_element_type=f32)
        out = out + jnp.dot(jnp.maximum(X, 0.0),
                            wblk("wlin", 2 * H, F, _LANE_PAD), preferred_element_type=f32)
        out_ref[...] = out + vrow("blin", _LANE_PAD)

    return kernel


def recurrent_gcn_forward(packed, a_norm, x_seq, output_seq_length):
    """x_seq: (T, num_nodes, node_features).  Returns (T, num_nodes, output_seq_length)."""
    T, n, f = x_seq.shape
    H = packed["H"]
    assert f == packed["F"]
    slab = packed["slab"]
    kernel = _make_kernel(f, H, packed["layout"])

    flops = 2 * T * (n * n * f + n * f * H + n * H * H + n * n * H
                     + n * (2 * H) * (3 * H) + n * H * (3 * H) + n * (2 * H + f) * _LANE_PAD)
    bytes_accessed = (a_norm.size * 2 + x_seq.size * 2 + slab.size * 2
                      + T * n * _LANE_PAD * 4)
    cost = pl.CostEstimate(flops=flops, transcendentals=T * n * H * 12,
                           bytes_accessed=bytes_accessed)

    out_padded = pl.pallas_call(
        kernel,
        out_shape=jax.ShapeDtypeStruct((T, n, _LANE_PAD), jnp.float32),
        grid=(T,),
        in_specs=[
            pl.BlockSpec((n, n), lambda t: (0, 0)),              # A_hat resident in VMEM
            pl.BlockSpec((None, n, f), lambda t: (t, 0, 0)),     # X streamed per timestep
            pl.BlockSpec(slab.shape, lambda t: (0, 0)),          # packed weights resident
        ],
        out_specs=pl.BlockSpec((None, n, _LANE_PAD), lambda t: (t, 0, 0)),
        compiler_params=pltpu.CompilerParams(dimension_semantics=("parallel",)),
        cost_estimate=cost,
    )(a_norm.astype(jnp.bfloat16), x_seq.astype(jnp.bfloat16), slab)
    return out_padded[:, :, :output_seq_length]


# ------------------------------ host-side glue -------------------------------
def build_norm_adj(edge_index, edge_weight, num_nodes):
    """Dense GCNConv-normalized adjacency with self-loops (weight 1)."""
    src = jnp.concatenate([edge_index[0], jnp.arange(num_nodes)])
    dst = jnp.concatenate([edge_index[1], jnp.arange(num_nodes)])
    w = jnp.concatenate([edge_weight,
                         jnp.ones((num_nodes,), dtype=edge_weight.dtype)])
    deg = jnp.zeros((num_nodes,), jnp.float32).at[dst].add(w)
    dinv = jnp.where(deg > 0, 1.0 / jnp.sqrt(deg), 0.0)
    norm = dinv[src] * w * dinv[dst]
    a = jnp.zeros((num_nodes, num_nodes), jnp.float32).at[dst, src].add(norm)
    return a


def init_raw_params(key, node_features, cell, out_len):
    """PyTorch-layout raw parameters (weight_hh omitted: it multiplies h0 == 0)."""
    F, H, OUT = node_features, cell, out_len
    ks = iter(jax.random.split(key, 24))
    u = lambda shape, s=0.2: jax.random.uniform(next(ks), shape, jnp.float32, -s, s)
    return dict(
        w1=u((H, F)), b1=u((H,)),
        bn1_gamma=1.0 + u((H,), 0.05), bn1_beta=u((H,), 0.05),
        bn1_mean=u((H,), 0.1), bn1_var=1.0 + jnp.abs(u((H,), 0.1)),
        w2=u((H, H)), b2=u((H,)),
        bn2_gamma=1.0 + u((H,), 0.05), bn2_beta=u((H,), 0.05),
        bn2_mean=u((H,), 0.1), bn2_var=1.0 + jnp.abs(u((H,), 0.1)),
        # LSTM1 input is cat([g1, g2]) (2H); LSTM2 input is h1 (H). Gate order i, f, g, o.
        w_ih1=u((4 * H, 2 * H)), b_ih1=u((4 * H,)), b_hh1=u((4 * H,)),
        w_ih2=u((4 * H, H)), b_ih2=u((4 * H,)), b_hh2=u((4 * H,)),
        w_lin=u((OUT, 2 * H + F)), b_lin=u((OUT,)),
    )


def pack_params(raw):
    """Split/fold/merge/pad raw PyTorch-layout params into ONE bf16 (rows, 128) slab."""
    H = raw["w2"].shape[0]
    F = raw["w1"].shape[1]
    OUT = raw["w_lin"].shape[0]
    assert OUT <= _LANE_PAD
    eps = 1e-5

    s1 = raw["bn1_gamma"] / jnp.sqrt(raw["bn1_var"] + eps)
    t1 = raw["bn1_beta"] - raw["bn1_mean"] * s1
    s2 = raw["bn2_gamma"] / jnp.sqrt(raw["bn2_var"] + eps)
    t2 = raw["bn2_beta"] - raw["bn2_mean"] * s2

    w1 = raw["w1"].T                                     # (F, H)
    w2 = raw["w2"].T                                     # (H, H)

    # LSTM1: keep gates i, g, o (forget gate multiplies c0 == 0); merge along output lanes.
    gate_rows = [slice(0, H), slice(2 * H, 3 * H), slice(3 * H, 4 * H)]
    bl1_full = raw["b_ih1"] + raw["b_hh1"]
    top_cols, bot_cols, bl1_cols = [], [], []
    for gs in gate_rows:
        wg = raw["w_ih1"][gs]                            # (H, 2H)
        w_from_g1 = wg[:, :H].T                          # acts on g1 (post-BN1)
        w_from_g2_raw = wg[:, H:].T                      # acts on g2_bn
        # fold BN2: g2_bn = s2 * g2 + t2  =>  g2 @ (s2[:,None]*W) + t2 @ W
        top_cols.append(w_from_g1)
        bot_cols.append(s2[:, None] * w_from_g2_raw)
        bl1_cols.append(bl1_full[gs] + t2 @ w_from_g2_raw)
    wl1 = jnp.concatenate([jnp.concatenate(top_cols, axis=1),
                           jnp.concatenate(bot_cols, axis=1)], axis=0)   # (2H, 3H)
    bl1 = jnp.concatenate(bl1_cols)                                      # (3H,)

    bl2_full = raw["b_ih2"] + raw["b_hh2"]
    wl2 = jnp.concatenate([raw["w_ih2"][gs].T for gs in gate_rows], axis=1)   # (H, 3H)
    bl2 = jnp.concatenate([bl2_full[gs] for gs in gate_rows])                 # (3H,)

    # Head: (OUT, 2H+F) -> (2H+F, 128) lane-dense with zero-padded output columns.
    wlin = jnp.pad(raw["w_lin"].T, ((0, 0), (0, _LANE_PAD - OUT)))
    blin = jnp.pad(raw["b_lin"], (0, _LANE_PAD - OUT))

    layout, rows = _slab_layout(F, H)
    slab = jnp.zeros((rows, _LANE_PAD), jnp.float32)
    slab = slab.at[layout["w1"]:layout["w1"] + F, :H].set(w1)
    slab = slab.at[layout["w2"]:layout["w2"] + H, :H].set(w2)
    slab = slab.at[layout["wl1"]:layout["wl1"] + 2 * H, :3 * H].set(wl1)
    slab = slab.at[layout["wl2"]:layout["wl2"] + H, :3 * H].set(wl2)
    slab = slab.at[layout["wlin"]:layout["wlin"] + 2 * H + F, :].set(wlin)
    slab = slab.at[layout["b1"], :H].set(raw["b1"])
    slab = slab.at[layout["s1"], :H].set(s1)
    slab = slab.at[layout["t1"], :H].set(t1)
    slab = slab.at[layout["b2"], :H].set(raw["b2"])
    slab = slab.at[layout["bl1"], :3 * H].set(bl1)
    slab = slab.at[layout["bl2"], :3 * H].set(bl2)
    slab = slab.at[layout["blin"], :].set(blin)

    return dict(slab=slab.astype(jnp.bfloat16), layout=layout, H=H, F=F)


def reference_forward(raw, a_norm, x):
    """Pure-JAX f32 reference following the PyTorch module math (eval mode, window=1)."""
    H = raw["w2"].shape[0]
    eps = 1e-5
    P = jax.lax.Precision.HIGHEST

    def gcn(inp, w, b, gamma, beta, mean, var):
        h = jnp.dot(a_norm, jnp.dot(inp, w.T, precision=P), precision=P) + b
        h = jnp.maximum(h, 0.0)
        return gamma * (h - mean) / jnp.sqrt(var + eps) + beta

    g1 = gcn(x, raw["w1"], raw["b1"], raw["bn1_gamma"], raw["bn1_beta"],
             raw["bn1_mean"], raw["bn1_var"])
    g2 = gcn(g1, raw["w2"], raw["b2"], raw["bn2_gamma"], raw["bn2_beta"],
             raw["bn2_mean"], raw["bn2_var"])
    cat = jnp.concatenate([g1, g2], axis=1)

    def lstm_step(inp, w_ih, b_ih, b_hh):                # h0 = c0 = 0
        gates = jnp.dot(inp, w_ih.T, precision=P) + b_ih + b_hh
        i = jax.nn.sigmoid(gates[:, 0 * H:1 * H])
        g = jnp.tanh(gates[:, 2 * H:3 * H])
        o = jax.nn.sigmoid(gates[:, 3 * H:4 * H])
        c = i * g                                        # f * c0 == 0
        return o * jnp.tanh(c)

    h1 = lstm_step(cat, raw["w_ih1"], raw["b_ih1"], raw["b_hh1"])
    h2 = lstm_step(h1, raw["w_ih2"], raw["b_ih2"], raw["b_hh2"])
    hh = jnp.maximum(jnp.concatenate([h1, h2, x], axis=1), 0.0)
    return jnp.dot(hh, raw["w_lin"].T, precision=P) + raw["b_lin"]


# ------------------------------- driver --------------------------------------
if __name__ == "__main__":
    NUM_NODES = 16          # num_nodes (window == 1)
    NODE_FEATURES = 4       # node_features
    CELL = 32               # MPNNLSTM hidden size
    OUTPUT_SEQ_LENGTH = 30  # output_seq_length = 30 * 1
    TIMESTEPS = 8           # grid axis: independent forward passes sharing A_hat / weights

    key = jax.random.PRNGKey(0)
    k_x, k_w, k_p = jax.random.split(key, 3)

    x_seq = jax.random.normal(k_x, (TIMESTEPS, NUM_NODES, NODE_FEATURES), jnp.float32)

    # small deterministic graph: bidirectional ring
    idx = jnp.arange(NUM_NODES)
    src = jnp.concatenate([idx, (idx + 1) % NUM_NODES])
    dst = jnp.concatenate([(idx + 1) % NUM_NODES, idx])
    edge_index = jnp.stack([src, dst])                                   # (2, 2N)
    edge_weight = jax.random.uniform(k_w, (edge_index.shape[1],),
                                     jnp.float32, 0.5, 1.5)

    a_norm = build_norm_adj(edge_index, edge_weight, NUM_NODES)
    raw_params = init_raw_params(k_p, NODE_FEATURES, CELL, OUTPUT_SEQ_LENGTH)
    packed = pack_params(raw_params)

    out = jax.block_until_ready(
        recurrent_gcn_forward(packed, a_norm, x_seq, OUTPUT_SEQ_LENGTH))
    ref = jax.vmap(lambda xt: reference_forward(raw_params, a_norm, xt))(x_seq)

    assert out.shape == (TIMESTEPS, NUM_NODES, OUTPUT_SEQ_LENGTH)
    # Kernel uses bf16 MXU operands (f32 accumulation) vs an f32 HIGHEST-precision reference;
    # tolerance loosened accordingly (per review), values are O(1) so 5e-2 is a safe bound.
    assert jnp.allclose(out, ref, atol=5e-2, rtol=5e-2), \
        float(jnp.max(jnp.abs(out - ref)))
    print("KERNEL_OK")
</pallas_src>

<mosaic_0001>
module attributes {stable_mosaic.version = 11 : i64} {
  func.func @kernel(%arg0: i32, %arg1: memref<16x16xbf16, #tpu.memory_space<vmem>>, %arg2: memref<1x16x4xbf16, #tpu.memory_space<vmem>>, %arg3: memref<216x128xbf16, #tpu.memory_space<vmem>>, %arg4: memref<1x16x128xf32, #tpu.memory_space<vmem>>) attributes {dimension_semantics = [#tpu.dimension_semantics<parallel>], iteration_bounds = array<i64: 8>, scalar_prefetch = 0 : i64, scratch_operands = 0 : i64, tpu.core_type = #tpu.core_type<tc>, window_params = [{pipeline_mode = #tpu.pipeline_mode<synchronous>, transform_indices = @transform_0, window_bounds = array<i64: 16, 16>}, {transform_indices = @transform_1, window_bounds = array<i64: 1, 16, 4>}, {pipeline_mode = #tpu.pipeline_mode<synchronous>, transform_indices = @transform_2, window_bounds = array<i64: 216, 128>}, {transform_indices = @transform_3, window_bounds = array<i64: 1, 16, 128>}]} {
    %c0 = arith.constant 0 : index
    %c0_0 = arith.constant 0 : index
    %0 = vector.load %arg1[%c0, %c0_0] : memref<16x16xbf16, #tpu.memory_space<vmem>>, vector<16x16xbf16>
    %c0_1 = arith.constant 0 : index
    %c0_2 = arith.constant 0 : index
    %c0_3 = arith.constant 0 : index
    %1 = vector.load %arg2[%c0_1, %c0_2, %c0_3] : memref<1x16x4xbf16, #tpu.memory_space<vmem>>, vector<1x16x4xbf16>
    %2 = vector.shape_cast %1 : vector<1x16x4xbf16> to vector<16x4xbf16>
    %cst = arith.constant dense<0.000000e+00> : vector<16x4xf32>
    %3 = tpu.matmul %0, %2, %cst {dimension_numbers = #tpu.dot_dimension_numbers<[1], [0], [0], [1], [0, 0, 1, 1], [], []>} : vector<16x16xbf16>, vector<16x4xbf16>, vector<16x4xf32> -> vector<16x4xf32>
    %4 = arith.truncf %3 : vector<16x4xf32> to vector<16x4xbf16>
    %c0_4 = arith.constant 0 : index
    %c0_5 = arith.constant 0 : index
    %5 = vector.load %arg3[%c0_4, %c0_5] : memref<216x128xbf16, #tpu.memory_space<vmem>>, vector<4x32xbf16>
    %cst_6 = arith.constant dense<0.000000e+00> : vector<16x32xf32>
    %6 = tpu.matmul %4, %5, %cst_6 {dimension_numbers = #tpu.dot_dimension_numbers<[1], [0], [0], [1], [0, 0, 1, 1], [], []>} : vector<16x4xbf16>, vector<4x32xbf16>, vector<16x32xf32> -> vector<16x32xf32>
    %c204 = arith.constant 204 : index
    %c0_7 = arith.constant 0 : index
    %7 = vector.load %arg3[%c204, %c0_7] : memref<216x128xbf16, #tpu.memory_space<vmem>>, vector<1x32xbf16>
    %8 = arith.extf %7 : vector<1x32xbf16> to vector<1x32xf32>
    %9 = vector.broadcast %8 : vector<1x32xf32> to vector<16x32xf32>
    %10 = arith.addf %6, %9 : vector<16x32xf32>
    %cst_8 = arith.constant 0.000000e+00 : f32
    %11 = vector.broadcast %cst_8 : f32 to vector<16x32xf32>
    %12 = arith.maximumf %10, %11 : vector<16x32xf32>
    %c205 = arith.constant 205 : index
    %c0_9 = arith.constant 0 : index
    %13 = vector.load %arg3[%c205, %c0_9] : memref<216x128xbf16, #tpu.memory_space<vmem>>, vector<1x32xbf16>
    %14 = arith.extf %13 : vector<1x32xbf16> to vector<1x32xf32>
    %15 = vector.broadcast %14 : vector<1x32xf32> to vector<16x32xf32>
    %16 = arith.mulf %12, %15 : vector<16x32xf32>
    %c206 = arith.constant 206 : index
    %c0_10 = arith.constant 0 : index
    %17 = vector.load %arg3[%c206, %c0_10] : memref<216x128xbf16, #tpu.memory_space<vmem>>, vector<1x32xbf16>
    %18 = arith.extf %17 : vector<1x32xbf16> to vector<1x32xf32>
    %19 = vector.broadcast %18 : vector<1x32xf32> to vector<16x32xf32>
    %20 = arith.addf %16, %19 : vector<16x32xf32>
    %21 = arith.truncf %20 : vector<16x32xf32> to vector<16x32xbf16>
    %c8 = arith.constant 8 : index
    %c0_11 = arith.constant 0 : index
    %22 = vector.load %arg3[%c8, %c0_11] : memref<216x128xbf16, #tpu.memory_space<vmem>>, vector<32x32xbf16>
    %cst_12 = arith.constant dense<0.000000e+00> : vector<16x32xf32>
    %23 = tpu.matmul %21, %22, %cst_12 {dimension_numbers = #tpu.dot_dimension_numbers<[1], [0], [0], [1], [0, 0, 1, 1], [], []>} : vector<16x32xbf16>, vector<32x32xbf16>, vector<16x32xf32> -> vector<16x32xf32>
    %24 = arith.truncf %23 : vector<16x32xf32> to vector<16x32xbf16>
    %cst_13 = arith.constant dense<0.000000e+00> : vector<16x32xf32>
    %25 = tpu.matmul %0, %24, %cst_13 {dimension_numbers = #tpu.dot_dimension_numbers<[1], [0], [0], [1], [0, 0, 1, 1], [], []>} : vector<16x16xbf16>, vector<16x32xbf16>, vector<16x32xf32> -> vector<16x32xf32>
    %c207 = arith.constant 207 : index
    %c0_14 = arith.constant 0 : index
    %26 = vector.load %arg3[%c207, %c0_14] : memref<216x128xbf16, #tpu.memory_space<vmem>>, vector<1x32xbf16>
    %27 = arith.extf %26 : vector<1x32xbf16> to vector<1x32xf32>
    %28 = vector.broadcast %27 : vector<1x32xf32> to vector<16x32xf32>
    %29 = arith.addf %25, %28 : vector<16x32xf32>
    %cst_15 = arith.constant 0.000000e+00 : f32
    %30 = vector.broadcast %cst_15 : f32 to vector<16x32xf32>
    %31 = arith.maximumf %29, %30 : vector<16x32xf32>
    %32 = arith.truncf %31 : vector<16x32xf32> to vector<16x32xbf16>
    %c40 = arith.constant 40 : index
    %c0_16 = arith.constant 0 : index
    %33 = vector.load %arg3[%c40, %c0_16] : memref<216x128xbf16, #tpu.memory_space<vmem>>, vector<32x96xbf16>
    %cst_17 = arith.constant dense<0.000000e+00> : vector<16x96xf32>
    %34 = tpu.matmul %21, %33, %cst_17 {dimension_numbers = #tpu.dot_dimension_numbers<[1], [0], [0], [1], [0, 0, 1, 1], [], []>} : vector<16x32xbf16>, vector<32x96xbf16>, vector<16x96xf32> -> vector<16x96xf32>
    %c72 = arith.constant 72 : index
    %c0_18 = arith.constant 0 : index
    %35 = vector.load %arg3[%c72, %c0_18] : memref<216x128xbf16, #tpu.memory_space<vmem>>, vector<32x96xbf16>
    %cst_19 = arith.constant dense<0.000000e+00> : vector<16x96xf32>
    %36 = tpu.matmul %32, %35, %cst_19 {dimension_numbers = #tpu.dot_dimension_numbers<[1], [0], [0], [1], [0, 0, 1, 1], [], []>} : vector<16x32xbf16>, vector<32x96xbf16>, vector<16x96xf32> -> vector<16x96xf32>
    %37 = arith.addf %34, %36 : vector<16x96xf32>
    %c208 = arith.constant 208 : index
    %c0_20 = arith.constant 0 : index
    %38 = vector.load %arg3[%c208, %c0_20] : memref<216x128xbf16, #tpu.memory_space<vmem>>, vector<1x96xbf16>
    %39 = arith.extf %38 : vector<1x96xbf16> to vector<1x96xf32>
    %40 = vector.broadcast %39 : vector<1x96xf32> to vector<16x96xf32>
    %41 = arith.addf %37, %40 : vector<16x96xf32>
    %42 = vector.extract_strided_slice %41 {offsets = [0, 0], sizes = [16, 32], strides = [1, 1]} : vector<16x96xf32> to vector<16x32xf32>
    %43 = arith.negf %42 : vector<16x32xf32>
    %44 = math.exp %43 : vector<16x32xf32>
    %cst_21 = arith.constant 1.000000e+00 : f32
    %45 = vector.broadcast %cst_21 : f32 to vector<16x32xf32>
    %46 = arith.addf %45, %44 : vector<16x32xf32>
    %47 = arith.divf %45, %46 : vector<16x32xf32>
    %48 = vector.extract_strided_slice %41 {offsets = [0, 32], sizes = [16, 32], strides = [1, 1]} : vector<16x96xf32> to vector<16x32xf32>
    %49 = math.tanh %48 : vector<16x32xf32>
    %50 = arith.mulf %47, %49 : vector<16x32xf32>
    %51 = vector.extract_strided_slice %41 {offsets = [0, 64], sizes = [16, 32], strides = [1, 1]} : vector<16x96xf32> to vector<16x32xf32>
    %52 = arith.negf %51 : vector<16x32xf32>
    %53 = math.exp %52 : vector<16x32xf32>
    %cst_22 = arith.constant 1.000000e+00 : f32
    %54 = vector.broadcast %cst_22 : f32 to vector<16x32xf32>
    %55 = arith.addf %54, %53 : vector<16x32xf32>
    %56 = arith.divf %54, %55 : vector<16x32xf32>
    %57 = math.tanh %50 : vector<16x32xf32>
    %58 = arith.mulf %56, %57 : vector<16x32xf32>
    %59 = arith.truncf %58 : vector<16x32xf32> to vector<16x32xbf16>
    %c104 = arith.constant 104 : index
    %c0_23 = arith.constant 0 : index
    %60 = vector.load %arg3[%c104, %c0_23] : memref<216x128xbf16, #tpu.memory_space<vmem>>, vector<32x96xbf16>
    %cst_24 = arith.constant dense<0.000000e+00> : vector<16x96xf32>
    %61 = tpu.matmul %59, %60, %cst_24 {dimension_numbers = #tpu.dot_dimension_numbers<[1], [0], [0], [1], [0, 0, 1, 1], [], []>} : vector<16x32xbf16>, vector<32x96xbf16>, vector<16x96xf32> -> vector<16x96xf32>
    %c209 = arith.constant 209 : index
    %c0_25 = arith.constant 0 : index
    %62 = vector.load %arg3[%c209, %c0_25] : memref<216x128xbf16, #tpu.memory_space<vmem>>, vector<1x96xbf16>
    %63 = arith.extf %62 : vector<1x96xbf16> to vector<1x96xf32>
    %64 = vector.broadcast %63 : vector<1x96xf32> to vector<16x96xf32>
    %65 = arith.addf %61, %64 : vector<16x96xf32>
    %66 = vector.extract_strided_slice %65 {offsets = [0, 0], sizes = [16, 32], strides = [1, 1]} : vector<16x96xf32> to vector<16x32xf32>
    %67 = arith.negf %66 : vector<16x32xf32>
    %68 = math.exp %67 : vector<16x32xf32>
    %cst_26 = arith.constant 1.000000e+00 : f32
    %69 = vector.broadcast %cst_26 : f32 to vector<16x32xf32>
    %70 = arith.addf %69, %68 : vector<16x32xf32>
    %71 = arith.divf %69, %70 : vector<16x32xf32>
    %72 = vector.extract_strided_slice %65 {offsets = [0, 32], sizes = [16, 32], strides = [1, 1]} : vector<16x96xf32> to vector<16x32xf32>
    %73 = math.tanh %72 : vector<16x32xf32>
    %74 = arith.mulf %71, %73 : vector<16x32xf32>
    %75 = vector.extract_strided_slice %65 {offsets = [0, 64], sizes = [16, 32], strides = [1, 1]} : vector<16x96xf32> to vector<16x32xf32>
    %76 = arith.negf %75 : vector<16x32xf32>
    %77 = math.exp %76 : vector<16x32xf32>
    %cst_27 = arith.constant 1.000000e+00 : f32
    %78 = vector.broadcast %cst_27 : f32 to vector<16x32xf32>
    %79 = arith.addf %78, %77 : vector<16x32xf32>
    %80 = arith.divf %78, %79 : vector<16x32xf32>
    %81 = math.tanh %74 : vector<16x32xf32>
    %82 = arith.mulf %80, %81 : vector<16x32xf32>
    %cst_28 = arith.constant 0.000000e+00 : f32
    %83 = vector.broadcast %cst_28 : f32 to vector<16x32xf32>
    %84 = arith.maximumf %58, %83 : vector<16x32xf32>
    %85 = arith.truncf %84 : vector<16x32xf32> to vector<16x32xbf16>
    %c136 = arith.constant 136 : index
    %c0_29 = arith.constant 0 : index
    %86 = vector.load %arg3[%c136, %c0_29] : memref<216x128xbf16, #tpu.memory_space<vmem>>, vector<32x128xbf16>
    %cst_30 = arith.constant dense<0.000000e+00> : vector<16x128xf32>
    %87 = tpu.matmul %85, %86, %cst_30 {dimension_numbers = #tpu.dot_dimension_numbers<[1], [0], [0], [1], [0, 0, 1, 1], [], []>} : vector<16x32xbf16>, vector<32x128xbf16>, vector<16x128xf32> -> vector<16x128xf32>
    %cst_31 = arith.constant 0.000000e+00 : f32
    %88 = vector.broadcast %cst_31 : f32 to vector<16x32xf32>
    %89 = arith.maximumf %82, %88 : vector<16x32xf32>
    %90 = arith.truncf %89 : vector<16x32xf32> to vector<16x32xbf16>
    %c168 = arith.constant 168 : index
    %c0_32 = arith.constant 0 : index
    %91 = vector.load %arg3[%c168, %c0_32] : memref<216x128xbf16, #tpu.memory_space<vmem>>, vector<32x128xbf16>
    %cst_33 = arith.constant dense<0.000000e+00> : vector<16x128xf32>
    %92 = tpu.matmul %90, %91, %cst_33 {dimension_numbers = #tpu.dot_dimension_numbers<[1], [0], [0], [1], [0, 0, 1, 1], [], []>} : vector<16x32xbf16>, vector<32x128xbf16>, vector<16x128xf32> -> vector<16x128xf32>
    %93 = arith.addf %87, %92 : vector<16x128xf32>
    %cst_34 = arith.constant 0.000000e+00 : bf16
    %94 = vector.broadcast %cst_34 : bf16 to vector<16x4xbf16>
    %95 = arith.maximumf %2, %94 : vector<16x4xbf16>
    %c200 = arith.constant 200 : index
    %c0_35 = arith.constant 0 : index
    %96 = vector.load %arg3[%c200, %c0_35] : memref<216x128xbf16, #tpu.memory_space<vmem>>, vector<4x128xbf16>
    %cst_36 = arith.constant dense<0.000000e+00> : vector<16x128xf32>
    %97 = tpu.matmul %95, %96, %cst_36 {dimension_numbers = #tpu.dot_dimension_numbers<[1], [0], [0], [1], [0, 0, 1, 1], [], []>} : vector<16x4xbf16>, vector<4x128xbf16>, vector<16x128xf32> -> vector<16x128xf32>
    %98 = arith.addf %93, %97 : vector<16x128xf32>
    %c210 = arith.constant 210 : index
    %c0_37 = arith.constant 0 : index
    %99 = vector.load %arg3[%c210, %c0_37] : memref<216x128xbf16, #tpu.memory_space<vmem>>, vector<1x128xbf16>
    %100 = arith.extf %99 : vector<1x128xbf16> to vector<1x128xf32>
    %101 = vector.broadcast %100 : vector<1x128xf32> to vector<16x128xf32>
    %102 = arith.addf %98, %101 : vector<16x128xf32>
    %c0_38 = arith.constant 0 : index
    %c0_39 = arith.constant 0 : index
    %c0_40 = arith.constant 0 : index
    %103 = vector.load %arg4[%c0_38, %c0_39, %c0_40] : memref<1x16x128xf32, #tpu.memory_space<vmem>>, vector<1x16x128xf32>
    %104 = vector.shape_cast %103 : vector<1x16x128xf32> to vector<16x128xf32>
    %105 = vector.shape_cast %102 : vector<16x128xf32> to vector<1x16x128xf32>
    tpu.vector_store %arg4[%c0_38, %c0_39, %c0_40], %105 {strides = array<i32>} : memref<1x16x128xf32, #tpu.memory_space<vmem>>, vector<1x16x128xf32>,
    return
  }
  func.func @transform_0(%arg0: i32) -> (i32, i32) {
    %c0_i32 = arith.constant 0 : i32
    %c0_i32_0 = arith.constant 0 : i32
    %c0_i32_1 = arith.constant 0 : i32
    return %c0_i32, %c0_i32_0 : i32, i32
  }
  func.func @transform_1(%arg0: i32) -> (i32, i32, i32) {
    %c0_i32 = arith.constant 0 : i32
    %c0_i32_0 = arith.constant 0 : i32
    %c0_i32_1 = arith.constant 0 : i32
    return %arg0, %c0_i32, %c0_i32_0 : i32, i32, i32
  }
  func.func @transform_2(%arg0: i32) -> (i32, i32) {
    %c0_i32 = arith.constant 0 : i32
    %c0_i32_0 = arith.constant 0 : i32
    %c0_i32_1 = arith.constant 0 : i32
    return %c0_i32, %c0_i32_0 : i32, i32
  }
  func.func @transform_3(%arg0: i32) -> (i32, i32, i32) {
    %c0_i32 = arith.constant 0 : i32
    %c0_i32_0 = arith.constant 0 : i32
    %c0_i32_1 = arith.constant 0 : i32
    return %arg0, %c0_i32, %c0_i32_0 : i32, i32, i32
  }
}

</mosaic_0001>

<llo_original>
// kernel: tpu_custom_call.1
$region0: #{tpu_custom_call.1}
  #allocation0 [shape = 'u32[]', space=smem, size = 0x4, offset = 0x4, fixed_abs, tag = 'smem constant byte address 0x4 - core index']
  #allocation1 [shape = 'u32[144,128]{1,0:T(1,128)}', space=vmem, size = 0x12000, scoped, tag = 'internal scratch']
  %s0 = inlined_call_operand.vmem [shape: bf16[16,16], index: 0, kind: input, shape index: {}]
  %s1 = inlined_call_operand.vmem [shape: bf16[8,16,4], index: 1, kind: input, shape index: {}]
  %s2 = inlined_call_operand.hbm [shape: bf16[216,128], index: 2, kind: input, shape index: {}]
  %s3 = inlined_call_operand.hbm [shape: f32[8,16,128], index: 3, kind: output, shape index: {}]
  %s4 = sld [smem:[#allocation0]]
  $region49: #{tpu_custom_call.1} parent=0
    _
  %s6 = ssub.s32 1, %s4
  %s7 = scalar_select 0, %s6, %s4
  $region1: #{tpu_custom_call.1} parent=0
    #allocation2 [shape = 'u8[55296]{0}', space=vmem, size = 0xd800, scoped, tag = 'input window, operand 2, single buffered']
    #allocation3 [shape = 's32[2]{0}', space=sflag, size = 0x8, scoped, tag = 'scoped memory for tpu_custom_call.1']
    #allocation4 [shape = 's32[2]{0}', space=sflag, size = 0x8, scoped, tag = 'scoped memory for tpu_custom_call.1']
    #allocation5 [shape = 'u8[16384]{0}', space=vmem, size = 0x4000, scoped, tag = 'output window, operand 0']
    %8 = vsyncpa [#allocation3], 0
    %9 = vsyncpa [#allocation4], 0
    %s10 = scalar_lea.sflag [#allocation4], 1
    %11 = vsyncpa %s10, 0
    loop: start=0, step=1, limit=10
    $region2: #{tpu_custom_call.1} parent=1 // loop_pre_header
      _
    $region3: #{tpu_custom_call.1} parent=1 // loop_header
      %s13 = sphi 0, %s17
      %p14 = scmp.ge.s32.totalorder %s13, 10
      %s21 = sphi 0, %s21
      %s23 = sphi 0, %s21
      %s24 = sphi 0, %s23
      %s38 = sphi 0, %s24
      %s44 = sphi 0, %s46
      %s47 = sphi 0, %s44
      %s48 = sphi 0, %s47
      %s64 = sphi 0, %s48
      %s68 = sphi 0, %s68
      %s70 = sphi 0, %s68
      %s71 = sphi 0, %s70
      %s85 = sphi 0, %s71
      %s91 = sphi 0, %s93
      %s94 = sphi 0, %s91
      %s95 = sphi 0, %s94
      %s111 = sphi 0, %s95
    $region4: #{tpu_custom_call.1} parent=1 // loop_header_branch
      %16 = sbr.rel (%p14) target = $region8
    $region5: #{tpu_custom_call.1} parent=1 // loop_body
      %s18 = ssub.s32 %s13, 1
      %s19 = ssub.s32 %s13, 2
      %s20 = sadd.s32 %s13, 1
      %s22 = sadd.s32 %s21, 1
      %p25 = scmp.eq.s32.totalorder %s13, 7
      %p26 = scmp.ne.s32.totalorder %s21, %s23
      %p27 = scmp.eq.s32.totalorder %s13, 0
      %p28 = por %p26, %p27
      %p29 = scmp.ne.s32.totalorder %s21, %s23
      %p30 = scmp.eq.s32.totalorder %s18, 7
      %p31 = por %p29, %p30
      %p32 = scmp.ne.s32.totalorder %s23, %s24
      %p33 = scmp.eq.s32.totalorder %s18, 0
      %p34 = por %p32, %p33
      %p35 = scmp.ne.s32.totalorder %s23, %s24
      %p36 = scmp.eq.s32.totalorder %s19, 7
      %p37 = por %p35, %p36
      %p39 = scmp.ne.s32.totalorder %s24, %s38
      %p40 = scmp.eq.s32.totalorder %s19, 0
      %p41 = por %p39, %p40
      %s42 = ssub.s32 %s13, %s20
      %p43 = scmp.eq.s32.totalorder %s42, 0
      %s45 = sadd.s32 %s44, 1
      %s46 = scalar_select %p43, %s44, %s45
      %p49 = pneg %p43
      %p50 = scmp.eq.s32.totalorder %s13, 7
      %p51 = por %p49, %p50
      %p52 = scmp.ne.s32.totalorder %s44, %s47
      %p53 = scmp.eq.s32.totalorder %s13, 0
      %p54 = por %p52, %p53
      %p55 = scmp.ne.s32.totalorder %s44, %s47
      %p56 = scmp.eq.s32.totalorder %s18, 7
      %p57 = por %p55, %p56
      %p58 = scmp.ne.s32.totalorder %s47, %s48
      %p59 = scmp.eq.s32.totalorder %s18, 0
      %p60 = por %p58, %p59
      %p61 = scmp.ne.s32.totalorder %s47, %s48
      %p62 = scmp.eq.s32.totalorder %s19, 7
      %p63 = por %p61, %p62
      %p65 = scmp.ne.s32.totalorder %s48, %s64
      %p66 = scmp.eq.s32.totalorder %s19, 0
      %p67 = por %p65, %p66
      %s69 = sadd.s32 %s68, 1
      %p72 = scmp.eq.s32.totalorder %s13, 7
      %p73 = scmp.ne.s32.totalorder %s68, %s70
      %p74 = scmp.eq.s32.totalorder %s13, 0
      %p75 = por %p73, %p74
      %p76 = scmp.ne.s32.totalorder %s68, %s70
      %p77 = scmp.eq.s32.totalorder %s18, 7
      %p78 = por %p76, %p77
      %p79 = scmp.ne.s32.totalorder %s70, %s71
      %p80 = scmp.eq.s32.totalorder %s18, 0
      %p81 = por %p79, %p80
      %p82 = scmp.ne.s32.totalorder %s70, %s71
      %p83 = scmp.eq.s32.totalorder %s19, 7
      %p84 = por %p82, %p83
      %p86 = scmp.ne.s32.totalorder %s71, %s85
      %p87 = scmp.eq.s32.totalorder %s19, 0
      %p88 = por %p86, %p87
      %s89 = ssub.s32 %s13, %s20
      %p90 = scmp.eq.s32.totalorder %s89, 0
      %s92 = sadd.s32 %s91, 1
      %s93 = scalar_select %p90, %s91, %s92
      %p96 = pneg %p90
      %p97 = scmp.eq.s32.totalorder %s13, 7
      %p98 = por %p96, %p97
      %p99 = scmp.ne.s32.totalorder %s91, %s94
      %p100 = scmp.eq.s32.totalorder %s13, 0
      %p101 = por %p99, %p100
      %p102 = scmp.ne.s32.totalorder %s91, %s94
      %p103 = scmp.eq.s32.totalorder %s18, 7
      %p104 = por %p102, %p103
      %p105 = scmp.ne.s32.totalorder %s94, %s95
      %p106 = scmp.eq.s32.totalorder %s18, 0
      %p107 = por %p105, %p106
      %p108 = scmp.ne.s32.totalorder %s94, %s95
      %p109 = scmp.eq.s32.totalorder %s19, 7
      %p110 = por %p108, %p109
      %p112 = scmp.ne.s32.totalorder %s95, %s111
      %p113 = scmp.eq.s32.totalorder %s19, 0
      %p114 = por %p112, %p113
      %p115 = scmp.le.s32.totalorder 1, %s13
      %p116 = scmp.lt.s32.totalorder %s13, 9
      %p117 = pnand %p115, %p116
      %p118 = pneg %p117
      // Predicated region
      $region9: #{tpu_custom_call.1} parent=5 // pred_check
        _
      $region10: #{tpu_custom_call.1} parent=5 // pred_check_branch
        %120 = sbr.rel (%p117) target = $region12
      $region11: #{tpu_custom_call.1} parent=5 // pred_region
        %s121 = ssub.s32 %s13, 1
        // Predicated region
        $region13: #{tpu_custom_call.1} parent=11 // pred_check
          %p122 = pneg %p34
        $region14: #{tpu_custom_call.1} parent=11 // pred_check_branch
          %124 = sbr.rel (%p122) target = $region16
        $region15: #{tpu_custom_call.1} parent=11 // pred_region
          _
        $region16: #{tpu_custom_call.1} parent=11 // pred_fallthru
          _
        // Predicated region
        $region17: #{tpu_custom_call.1} parent=11 // pred_check
          %p125 = pneg %p81
        $region18: #{tpu_custom_call.1} parent=11 // pred_check_branch
          %127 = sbr.rel (%p125) target = $region20
        $region19: #{tpu_custom_call.1} parent=11 // pred_region
          %s129 = ssub.s32 1728, 1728
          %130 = vsyncadd [#allocation3], %s129
          %s131 = sshll.u32 [#allocation2], 4
          %s132 = int_to_ptr.vmem [resolvable:$true] %s131
          %137 = dma.hbm_to_vmem [thread:$0]  %s2, 1728, %s132, [#allocation3], 64, 64, 4
        $region20: #{tpu_custom_call.1} parent=11 // pred_fallthru
          _
      $region12: #{tpu_custom_call.1} parent=5 // pred_fallthru
        _
      %p138 = scmp.lt.s32.totalorder %s13, 8
      // Predicated region
      $region21: #{tpu_custom_call.1} parent=5 // pred_check
        %p139 = pneg %p138
      $region22: #{tpu_custom_call.1} parent=5 // pred_check_branch
        %141 = sbr.rel (%p139) target = $region24
      $region23: #{tpu_custom_call.1} parent=5 // pred_region
        // Predicated region
        $region25: #{tpu_custom_call.1} parent=23 // pred_check
          %p142 = pneg %p54
        $region26: #{tpu_custom_call.1} parent=23 // pred_check_branch
          %144 = sbr.rel (%p142) target = $region28
        $region27: #{tpu_custom_call.1} parent=23 // pred_region
          %p145 = scmp.lt.s32.totalorder %s13, 7
          %s146 = scalar_select %p145, %s13, 7
          %s147 = smul.addr %s146, 2
          %s148 = smul.addr %s147, 4
          %s149 = scalar_lea.vmem %s1, %s148
        $region28: #{tpu_custom_call.1} parent=23 // pred_fallthru
          _
      $region24: #{tpu_custom_call.1} parent=5 // pred_fallthru
        _
      %p150 = scmp.le.s32.totalorder 1, %s13
      %p151 = scmp.lt.s32.totalorder %s13, 9
      %p152 = pnand %p150, %p151
      %p153 = pneg %p152
      // Predicated region
      $region29: #{tpu_custom_call.1} parent=5 // pred_check
        _
      $region30: #{tpu_custom_call.1} parent=5 // pred_check_branch
        %155 = sbr.rel (%p152) target = $region32
      $region31: #{tpu_custom_call.1} parent=5 // pred_region
        %s156 = ssub.s32 %s13, 1
        // Predicated region
        $region33: #{tpu_custom_call.1} parent=31 // pred_check
          %p157 = pneg %p81
        $region34: #{tpu_custom_call.1} parent=31 // pred_check_branch
          %159 = sbr.rel (%p157) target = $region36
        $region35: #{tpu_custom_call.1} parent=31 // pred_region
          %160 = dma.done [#allocation3], 1728
        $region36: #{tpu_custom_call.1} parent=31 // pred_fallthru
          _
        %p161 = pneg %p34
        %p162 = pneg %p31
        %p163 = scmp.lt.s32.totalorder %s18, 7
        %s164 = scalar_select %p163, %s18, 7
        %s165 = smul.addr %s164, 2
        %s166 = smul.addr %s165, 4
        %s167 = scalar_lea.vmem %s1, %s166
        %p168 = pneg %p60
        %p169 = pneg %p57
        %p170 = pneg %p81
        %p171 = pneg %p78
        %p172 = pneg %p107
        %p173 = pneg %p104
        %s174 = sand.u32 %s94, 1
        %s175 = scalar_lea.sflag [#allocation4], %s174
        %s176 = sand.u32 %s94, 1
        %s177 = smul.addr %s176, 16
        %s178 = scalar_lea.vmem [#allocation5], %s177
        %p179 = scmp.lt.s32.totalorder %s18, 7
        %s180 = scalar_select %p179, %s18, 7
        %s181 = smul.addr %s180, 2
        %s182 = smul.addr %s181, 4
        %s183 = scalar_lea.vmem %s1, %s182
        %v185 = vld [vmem:[%s0] sm:$0xf]
        %v186 = vld [vmem:[%s0 + $0x4] sm:$0xf]
        %v187 = vld [vmem:[%s183] sm:$0xf]
        %v188 = vld [vmem:[%s183 + $0x4] sm:$0xf]
        %v191 = vunpack.c.l.b16 %v185
        %v192 = vunpack.c.l.b16 %v186
        %v193 = vpack.c.b16 %v192, %v191
        %v196 = vunpack.c.l.b16 %v187
        %v197 = vunpack.c.l.b16 %v188
        %v198 = vpack.c.b16 %v197, %v196
        %vm200 = vcmask 130048
        %v202 = vsel %vm200, %v193, 0
        %204 = vmatprep.subr.bf16.mxu0 0
        %205 = vmatpush1.bf16.msra.mxu0 0
        %206 = vmatprep.subr.bf16.mxu0 0
        %207 = vmatpush1.bf16.msra.mxu0 0
        %208 = vmatprep.subr.bf16.mxu0 0
        %209 = vmatpush1.bf16.msra.mxu0 0
        %210 = vmatprep.subr.bf16.mxu0 0
        %211 = vmatpush1.bf16.msra.mxu0 0
        %212 = vmatprep.subr.bf16.mxu0 0
        %213 = vmatpush1.bf16.msra.mxu0 0
        %214 = vmatprep.subr.bf16.mxu0 0
        %215 = vmatpush1.bf16.msra.mxu0 0
        %216 = vmatprep.subr.bf16.mxu0 0
        %217 = vmatpush1.bf16.msra.mxu0 0
        %218 = vmatprep.subr.bf16.mxu0 0
        %219 = vmatpush1.bf16.msra.mxu0 %v198
        %220 = vmatprep.subr.bf16.mxu0 0
        %221 = vmatpush2.bf16.msra.mxu0 0
        %222 = vmatprep.subr.bf16.mxu0 0
        %223 = vmatpush2.bf16.msra.mxu0 0
        %224 = vmatprep.subr.bf16.mxu0 0
        %225 = vmatpush2.bf16.msra.mxu0 0
        %226 = vmatprep.subr.bf16.mxu0 0
        %227 = vmatpush2.bf16.msra.mxu0 0
        %228 = vmatprep.subr.bf16.mxu0 0
        %229 = vmatpush2.bf16.msra.mxu0 0
        %230 = vmatprep.subr.bf16.mxu0 0
        %231 = vmatpush2.bf16.msra.mxu0 0
        %232 = vmatprep.subr.bf16.mxu0 0
        %233 = vmatpush2.bf16.msra.mxu0 0
        %234 = vmatprep.subr.bf16.mxu0 0
        %235 = vmatpush2.bf16.msra.mxu0 0
        %236 = vmatprep.mubr.bf16.mxu0 0
        %237 = vmatmul.mubr.bf16.gmra.mxu0 %v202
        %v238 = vpop.f32.mrf.mxu0
        %v239 = vadd.f32 0.0, %v238
        %v240 = vpop.f32.mrf.mxu0
        %v241 = vpop.f32.mrf.mxu0
        %v242 = vadd.f32 0.0, %v241
        %v243 = vpop.f32.mrf.mxu0
        %244 = vdwg.mxu0
        %v245 = vpack.c.bf16 %v242, %v239
        %v246 = vld [vmem:[#allocation2] sm:$0x3]
        %v247 = vld [vmem:[#allocation2 + $0x64] sm:$0x4]
        %v248 = vunpack.c.l.bf16 %v247
        %v249 = vlaneseq
        %v250 = vshrl.u32 %v249, 7
        %v251 = vsub.s32 4, %v250
        %v252 = vrot.slane %v248, %v251
        %vm253 = vcmask 31744
        %v255 = vsel %vm253, %v245, 0
        %vm257 = vcmask 1041408
        %v259 = vsel %vm257, %v246, 0
        %261 = vmatprep.subr.bf16.mxu0 0
        %262 = vmatpush1.bf16.msra.mxu0 0
        %263 = vmatprep.subr.bf16.mxu0 0
        %264 = vmatpush1.bf16.msra.mxu0 0
        %265 = vmatprep.subr.bf16.mxu0 0
        %266 = vmatpush1.bf16.msra.mxu0 0
        %267 = vmatprep.subr.bf16.mxu0 0
        %268 = vmatpush1.bf16.msra.mxu0 0
        %269 = vmatprep.subr.bf16.mxu0 0
        %270 = vmatpush1.bf16.msra.mxu0 0
        %271 = vmatprep.subr.bf16.mxu0 0
        %272 = vmatpush1.bf16.msra.mxu0 0
        %273 = vmatprep.subr.bf16.mxu0 0
        %274 = vmatpush1.bf16.msra.mxu0 0
        %275 = vmatprep.subr.bf16.mxu0 0
        %276 = vmatpush1.bf16.msra.mxu0 %v259
        %277 = vmatprep.subr.bf16.mxu0 0
        %278 = vmatpush2.bf16.msra.mxu0 0
        %279 = vmatprep.subr.bf16.mxu0 0
        %280 = vmatpush2.bf16.msra.mxu0 0
        %281 = vmatprep.subr.bf16.mxu0 0
        %282 = vmatpush2.bf16.msra.mxu0 0
        %283 = vmatprep.subr.bf16.mxu0 0
        %284 = vmatpush2.bf16.msra.mxu0 0
        %285 = vmatprep.subr.bf16.mxu0 0
        %286 = vmatpush2.bf16.msra.mxu0 0
        %287 = vmatprep.subr.bf16.mxu0 0
        %288 = vmatpush2.bf16.msra.mxu0 0
        %289 = vmatprep.subr.bf16.mxu0 0
        %290 = vmatpush2.bf16.msra.mxu0 0
        %291 = vmatprep.subr.bf16.mxu0 0
        %292 = vmatpush2.bf16.msra.mxu0 0
        %293 = vmatprep.mubr.bf16.mxu0 0
        %294 = vmatmul.mubr.bf16.gmra.mxu0 %v255
        %v295 = vpop.f32.mrf.mxu0
        %v296 = vadd.f32 %v252, %v295
        %v297 = vpop.f32.mrf.mxu0
        %v298 = vpop.f32.mrf.mxu0
        %v299 = vadd.f32 %v252, %v298
        %v300 = vpop.f32.mrf.mxu0
        %301 = vdwg.mxu0
        %v302 = vmax.f32 %v296, 0.0
        %v303 = vmax.f32 %v299, 0.0
        %v304 = vlaneseq
        %v305 = vshrl.u32 %v304, 7
        %v306 = vsub.s32 5, %v305
        %v307 = vrot.slane %v248, %v306
        %v308 = vmul.f32 %v302, %v307
        %v309 = vmul.f32 %v303, %v307
        %v310 = vld [vmem:[#allocation2 + $0x64] sm:$0x8]
        %v311 = vunpack.c.l.bf16 %v310
        %v312 = vlaneseq
        %v313 = vshrl.u32 %v312, 7
        %v314 = vsub.s32 6, %v313
        %v315 = vrot.slane %v311, %v314
        %v316 = vadd.f32 %v308, %v315
        %v317 = vadd.f32 %v309, %v315
        %v318 = vpack.c.bf16 %v317, %v316
        %v319 = vld [vmem:[#allocation2 + $0x4] sm:$0xf]
        %v320 = vld [vmem:[#allocation2 + $0x8] sm:$0xf]
        %v321 = vld [vmem:[#allocation2 + $0xc] sm:$0xf]
        %v322 = vld [vmem:[#allocation2 + $0x10] sm:$0xf]
        %v327 = vunpack.c.l.b16 %v319
        %v328 = vunpack.c.l.b16 %v320
        %v329 = vunpack.c.l.b16 %v321
        %v330 = vunpack.c.l.b16 %v322
        %v331 = vpack.c.b16 %v328, %v327
        %v332 = vpack.c.b16 %v330, %v329
        %vm335 = vcmask 261120
        %v337 = vsel %vm335, %v318, 0
        %339 = vmatprep.subr.bf16.mxu0 0
        %340 = vmatpush1.bf16.msra.mxu0 0
        %341 = vmatprep.subr.bf16.mxu0 0
        %342 = vmatpush1.bf16.msra.mxu0 0
        %343 = vmatprep.subr.bf16.mxu0 0
        %344 = vmatpush1.bf16.msra.mxu0 0
        %345 = vmatprep.subr.bf16.mxu0 0
        %346 = vmatpush1.bf16.msra.mxu0 0
        %347 = vmatprep.subr.bf16.mxu0 0
        %348 = vmatpush1.bf16.msra.mxu0 0
        %349 = vmatprep.subr.bf16.mxu0 0
        %350 = vmatpush1.bf16.msra.mxu0 0
        %351 = vmatprep.subr.bf16.mxu0 0
        %352 = vmatpush1.bf16.msra.mxu0 %v332
        %353 = vmatprep.subr.bf16.mxu0 0
        %354 = vmatpush1.bf16.msra.mxu0 %v331
        %355 = vmatprep.subr.bf16.mxu0 0
        %356 = vmatpush2.bf16.msra.mxu0 0
        %357 = vmatprep.subr.bf16.mxu0 0
        %358 = vmatpush2.bf16.msra.mxu0 0
        %359 = vmatprep.subr.bf16.mxu0 0
        %360 = vmatpush2.bf16.msra.mxu0 0
        %361 = vmatprep.subr.bf16.mxu0 0
        %362 = vmatpush2.bf16.msra.mxu0 0
        %363 = vmatprep.subr.bf16.mxu0 0
        %364 = vmatpush2.bf16.msra.mxu0 0
        %365 = vmatprep.subr.bf16.mxu0 0
        %366 = vmatpush2.bf16.msra.mxu0 0
        %367 = vmatprep.subr.bf16.mxu0 0
        %368 = vmatpush2.bf16.msra.mxu0 0
        %369 = vmatprep.subr.bf16.mxu0 0
        %370 = vmatpush2.bf16.msra.mxu0 0
        %371 = vmatprep.mubr.bf16.mxu0 0
        %372 = vmatmul.mubr.bf16.gmra.mxu0 %v337
        %v373 = vpop.f32.mrf.mxu0
        %v374 = vadd.f32 0.0, %v373
        %v375 = vpop.f32.mrf.mxu0
        %v376 = vpop.f32.mrf.mxu0
        %v377 = vadd.f32 0.0, %v376
        %v378 = vpop.f32.mrf.mxu0
        %379 = vdwg.mxu0
        %v380 = vpack.c.bf16 %v377, %v374
        %v381 = vlaneseq
        %v382 = vshrl.u32 %v381, 7
        %v383 = vsub.s32 7, %v382
        %v384 = vrot.slane %v311, %v383
        %385 = vmatprep.subr.bf16.mxu0 0
        %386 = vmatpush1.bf16.msra.mxu0 0
        %387 = vmatprep.subr.bf16.mxu0 0
        %388 = vmatpush1.bf16.msra.mxu0 0
        %389 = vmatprep.subr.bf16.mxu0 0
        %390 = vmatpush1.bf16.msra.mxu0 0
        %391 = vmatprep.subr.bf16.mxu0 0
        %392 = vmatpush1.bf16.msra.mxu0 0
        %393 = vmatprep.subr.bf16.mxu0 0
        %394 = vmatpush1.bf16.msra.mxu0 0
        %395 = vmatprep.subr.bf16.mxu0 0
        %396 = vmatpush1.bf16.msra.mxu0 0
        %397 = vmatprep.subr.bf16.mxu0 0
        %398 = vmatpush1.bf16.msra.mxu0 0
        %399 = vmatprep.subr.bf16.mxu0 0
        %400 = vmatpush1.bf16.msra.mxu0 %v380
        %401 = vmatprep.subr.bf16.mxu0 0
        %402 = vmatpush2.bf16.msra.mxu0 0
        %403 = vmatprep.subr.bf16.mxu0 0
        %404 = vmatpush2.bf16.msra.mxu0 0
        %405 = vmatprep.subr.bf16.mxu0 0
        %406 = vmatpush2.bf16.msra.mxu0 0
        %407 = vmatprep.subr.bf16.mxu0 0
        %408 = vmatpush2.bf16.msra.mxu0 0
        %409 = vmatprep.subr.bf16.mxu0 0
        %410 = vmatpush2.bf16.msra.mxu0 0
        %411 = vmatprep.subr.bf16.mxu0 0
        %412 = vmatpush2.bf16.msra.mxu0 0
        %413 = vmatprep.subr.bf16.mxu0 0
        %414 = vmatpush2.bf16.msra.mxu0 0
        %415 = vmatprep.subr.bf16.mxu0 0
        %416 = vmatpush2.bf16.msra.mxu0 0
        %417 = vmatprep.mubr.bf16.mxu0 0
        %418 = vmatmul.mubr.bf16.gmra.mxu0 %v202
        %v419 = vpop.f32.mrf.mxu0
        %v420 = vadd.f32 %v384, %v419
        %v421 = vpop.f32.mrf.mxu0
        %v422 = vpop.f32.mrf.mxu0
        %v423 = vadd.f32 %v384, %v422
        %v424 = vpop.f32.mrf.mxu0
        %425 = vdwg.mxu0
        %v426 = vmax.f32 %v420, 0.0
        %v427 = vmax.f32 %v423, 0.0
        %v428 = vpack.c.bf16 %v427, %v426
        %v429 = vld [vmem:[#allocation2 + $0x14] sm:$0xf]
        %v430 = vld [vmem:[#allocation2 + $0x18] sm:$0xf]
        %v431 = vld [vmem:[#allocation2 + $0x1c] sm:$0xf]
        %v432 = vld [vmem:[#allocation2 + $0x20] sm:$0xf]
        %v433 = vld [vmem:[#allocation2 + $0x24] sm:$0xf]
        %v434 = vld [vmem:[#allocation2 + $0x28] sm:$0xf]
        %v435 = vld [vmem:[#allocation2 + $0x2c] sm:$0xf]
        %v436 = vld [vmem:[#allocation2 + $0x30] sm:$0xf]
        %v441 = vunpack.c.l.b16 %v433
        %v442 = vunpack.c.l.b16 %v434
        %v443 = vunpack.c.l.b16 %v435
        %v444 = vunpack.c.l.b16 %v436
        %v445 = vpack.c.b16 %v442, %v441
        %v446 = vpack.c.b16 %v444, %v443
        %v450 = vsel %vm335, %v428, 0
        %452 = vmatprep.subr.bf16.mxu0 0
        %453 = vmatpush1.bf16.msra.mxu0 0
        %454 = vmatprep.subr.bf16.mxu0 0
        %455 = vmatpush1.bf16.msra.mxu0 0
        %456 = vmatprep.subr.bf16.mxu0 0
        %457 = vmatpush1.bf16.msra.mxu0 0
        %458 = vmatprep.subr.bf16.mxu0 0
        %459 = vmatpush1.bf16.msra.mxu0 0
        %460 = vmatprep.subr.bf16.mxu0 0
        %461 = vmatpush1.bf16.msra.mxu0 0
        %462 = vmatprep.subr.bf16.mxu0 0
        %463 = vmatpush1.bf16.msra.mxu0 0
        %464 = vmatprep.subr.bf16.mxu0 0
        %465 = vmatpush1.bf16.msra.mxu0 %v446
        %466 = vmatprep.subr.bf16.mxu0 0
        %467 = vmatpush1.bf16.msra.mxu0 %v445
        %468 = vmatprep.subr.bf16.mxu0 0
        %469 = vmatpush2.bf16.msra.mxu0 0
        %470 = vmatprep.subr.bf16.mxu0 0
        %471 = vmatpush2.bf16.msra.mxu0 0
        %472 = vmatprep.subr.bf16.mxu0 0
        %473 = vmatpush2.bf16.msra.mxu0 0
        %474 = vmatprep.subr.bf16.mxu0 0
        %475 = vmatpush2.bf16.msra.mxu0 0
        %476 = vmatprep.subr.bf16.mxu0 0
        %477 = vmatpush2.bf16.msra.mxu0 0
        %478 = vmatprep.subr.bf16.mxu0 0
        %479 = vmatpush2.bf16.msra.mxu0 0
        %480 = vmatprep.subr.bf16.mxu0 0
        %481 = vmatpush2.bf16.msra.mxu0 0
        %482 = vmatprep.subr.bf16.mxu0 0
        %483 = vmatpush2.bf16.msra.mxu0 0
        %484 = vmatprep.mubr.bf16.mxu0 0
        %485 = vmatmul.mubr.bf16.gmra.mxu0 %v450
        %v486 = vpop.f32.mrf.mxu0
        %v487 = vadd.f32 0.0, %v486
        %v488 = vpop.f32.mrf.mxu0
        %v489 = vpop.f32.mrf.mxu0
        %v490 = vadd.f32 0.0, %v489
        %v491 = vpop.f32.mrf.mxu0
        %492 = vdwg.mxu0
        %v497 = vunpack.c.l.b16 %v429
        %v498 = vunpack.c.l.b16 %v430
        %v499 = vunpack.c.l.b16 %v431
        %v500 = vunpack.c.l.b16 %v432
        %v501 = vpack.c.b16 %v498, %v497
        %v502 = vpack.c.b16 %v500, %v499
        %505 = vmatprep.subr.bf16.mxu0 0
        %506 = vmatpush1.bf16.msra.mxu0 0
        %507 = vmatprep.subr.bf16.mxu0 0
        %508 = vmatpush1.bf16.msra.mxu0 0
        %509 = vmatprep.subr.bf16.mxu0 0
        %510 = vmatpush1.bf16.msra.mxu0 0
        %511 = vmatprep.subr.bf16.mxu0 0
        %512 = vmatpush1.bf16.msra.mxu0 0
        %513 = vmatprep.subr.bf16.mxu0 0
        %514 = vmatpush1.bf16.msra.mxu0 0
        %515 = vmatprep.subr.bf16.mxu0 0
        %516 = vmatpush1.bf16.msra.mxu0 0
        %517 = vmatprep.subr.bf16.mxu0 0
        %518 = vmatpush1.bf16.msra.mxu0 %v502
        %519 = vmatprep.subr.bf16.mxu0 0
        %520 = vmatpush1.bf16.msra.mxu0 %v501
        %521 = vmatprep.subr.bf16.mxu0 0
        %522 = vmatpush2.bf16.msra.mxu0 0
        %523 = vmatprep.subr.bf16.mxu0 0
        %524 = vmatpush2.bf16.msra.mxu0 0
        %525 = vmatprep.subr.bf16.mxu0 0
        %526 = vmatpush2.bf16.msra.mxu0 0
        %527 = vmatprep.subr.bf16.mxu0 0
        %528 = vmatpush2.bf16.msra.mxu0 0
        %529 = vmatprep.subr.bf16.mxu0 0
        %530 = vmatpush2.bf16.msra.mxu0 0
        %531 = vmatprep.subr.bf16.mxu0 0
        %532 = vmatpush2.bf16.msra.mxu0 0
        %533 = vmatprep.subr.bf16.mxu0 0
        %534 = vmatpush2.bf16.msra.mxu0 0
        %535 = vmatprep.subr.bf16.mxu0 0
        %536 = vmatpush2.bf16.msra.mxu0 0
        %537 = vmatprep.mubr.bf16.mxu0 0
        %538 = vmatmul.mubr.bf16.gmra.mxu0 %v337
        %v539 = vpop.f32.mrf.mxu0
        %v540 = vadd.f32 %v487, %v539
        %v541 = vpop.f32.mrf.mxu0
        %v542 = vpop.f32.mrf.mxu0
        %v543 = vadd.f32 %v490, %v542
        %v544 = vpop.f32.mrf.mxu0
        %545 = vdwg.mxu0
        %v546 = vld [vmem:[#allocation2 + $0x68] sm:$0x1]
        %v547 = vunpack.c.l.bf16 %v546
        %v548 = vlaneseq
        %v549 = vshrl.u32 %v548, 7
        %v550 = vsub.s32 0, %v549
        %v551 = vrot.slane %v547, %v550
        %v552 = vadd.f32 %v540, %v551
        %v553 = vadd.f32 %v543, %v551
        %v554 = vxor.u32 %v552, 2147483648
        %v555 = vxor.u32 %v553, 2147483648
        %v556 = vmul.f32 %v554, 1.442695
        %v557 = vpow.pop %v556
        %v558 = vmul.f32 %v555, 1.442695
        %v559 = vpow.pop %v558
        %v560 = vadd.f32 %v557, 1.0
        %v561 = vadd.f32 %v559, 1.0
        %v562 = vrcp.pop %v560
        %v563 = vmul.f32 1.0, %v562
        %v564 = vrcp.pop %v561
        %v565 = vmul.f32 1.0, %v564
        %v566 = vtanh.pop %v552
        %v567 = vtanh.pop %v553
        %570 = vrot.lane.b32.xlu0 %v566, 96
        %v571 = vpop.permute.xlu0 %570
        %572 = vrot.lane.b32.xlu0 %v567, 96
        %v573 = vpop.permute.xlu0 %572
        %v576 = vmul.f32 %v563, %v571
        %v577 = vmul.f32 %v565, %v573
        %v578 = vtanh.pop %v576
        %v579 = vtanh.pop %v577
        %582 = vrot.lane.b32.xlu0 %v578, 64
        %v583 = vpop.permute.xlu0 %582
        %584 = vrot.lane.b32.xlu0 %v579, 64
        %v585 = vpop.permute.xlu0 %584
        %v588 = vmul.f32 %v563, %v583
        %v589 = vmul.f32 %v565, %v585
        %v590 = vpack.c.bf16 %v589, %v588
        %v591 = vld [vmem:[#allocation2 + $0x34] sm:$0xf]
        %v592 = vld [vmem:[#allocation2 + $0x38] sm:$0xf]
        %v593 = vld [vmem:[#allocation2 + $0x3c] sm:$0xf]
        %v594 = vld [vmem:[#allocation2 + $0x40] sm:$0xf]
        %v595 = vlaneseq
        %v596 = vshrl.u32 %v595, 7
        %v597 = vsub.s32 1, %v596
        %v598 = vrot.slane %v547, %v597
        %600 = vrot.lane.b32.xlu0 %v590, 64
        %v601 = vpop.permute.xlu0 %600
        %v606 = vunpack.c.l.b16 %v591
        %v607 = vunpack.c.l.b16 %v592
        %v608 = vunpack.c.l.b16 %v593
        %v609 = vunpack.c.l.b16 %v594
        %v610 = vpack.c.b16 %v607, %v606
        %v611 = vpack.c.b16 %v609, %v608
        %v615 = vsel %vm335, %v601, 0
        %617 = vmatprep.subr.bf16.mxu0 0
        %618 = vmatpush1.bf16.msra.mxu0 0
        %619 = vmatprep.subr.bf16.mxu0 0
        %620 = vmatpush1.bf16.msra.mxu0 0
        %621 = vmatprep.subr.bf16.mxu0 0
        %622 = vmatpush1.bf16.msra.mxu0 0
        %623 = vmatprep.subr.bf16.mxu0 0
        %624 = vmatpush1.bf16.msra.mxu0 0
        %625 = vmatprep.subr.bf16.mxu0 0
        %626 = vmatpush1.bf16.msra.mxu0 0
        %627 = vmatprep.subr.bf16.mxu0 0
        %628 = vmatpush1.bf16.msra.mxu0 0
        %629 = vmatprep.subr.bf16.mxu0 0
        %630 = vmatpush1.bf16.msra.mxu0 %v611
        %631 = vmatprep.subr.bf16.mxu0 0
        %632 = vmatpush1.bf16.msra.mxu0 %v610
        %633 = vmatprep.subr.bf16.mxu0 0
        %634 = vmatpush2.bf16.msra.mxu0 0
        %635 = vmatprep.subr.bf16.mxu0 0
        %636 = vmatpush2.bf16.msra.mxu0 0
        %637 = vmatprep.subr.bf16.mxu0 0
        %638 = vmatpush2.bf16.msra.mxu0 0
        %639 = vmatprep.subr.bf16.mxu0 0
        %640 = vmatpush2.bf16.msra.mxu0 0
        %641 = vmatprep.subr.bf16.mxu0 0
        %642 = vmatpush2.bf16.msra.mxu0 0
        %643 = vmatprep.subr.bf16.mxu0 0
        %644 = vmatpush2.bf16.msra.mxu0 0
        %645 = vmatprep.subr.bf16.mxu0 0
        %646 = vmatpush2.bf16.msra.mxu0 0
        %647 = vmatprep.subr.bf16.mxu0 0
        %648 = vmatpush2.bf16.msra.mxu0 0
        %649 = vmatprep.mubr.bf16.mxu0 0
        %650 = vmatmul.mubr.bf16.gmra.mxu0 %v615
        %v651 = vpop.f32.mrf.mxu0
        %v652 = vadd.f32 %v598, %v651
        %v653 = vpop.f32.mrf.mxu0
        %v654 = vpop.f32.mrf.mxu0
        %v655 = vadd.f32 %v598, %v654
        %v656 = vpop.f32.mrf.mxu0
        %657 = vdwg.mxu0
        %v658 = vxor.u32 %v652, 2147483648
        %v659 = vxor.u32 %v655, 2147483648
        %v660 = vmul.f32 %v658, 1.442695
        %v661 = vpow.pop %v660
        %v662 = vmul.f32 %v659, 1.442695
        %v663 = vpow.pop %v662
        %v664 = vadd.f32 %v661, 1.0
        %v665 = vadd.f32 %v663, 1.0
        %v666 = vrcp.pop %v664
        %v667 = vmul.f32 1.0, %v666
        %v668 = vrcp.pop %v665
        %v669 = vmul.f32 1.0, %v668
        %v670 = vtanh.pop %v652
        %v671 = vtanh.pop %v655
        %674 = vrot.lane.b32.xlu0 %v670, 96
        %v675 = vpop.permute.xlu0 %674
        %676 = vrot.lane.b32.xlu0 %v671, 96
        %v677 = vpop.permute.xlu0 %676
        %v680 = vmul.f32 %v667, %v675
        %v681 = vmul.f32 %v669, %v677
        %v682 = vtanh.pop %v680
        %v683 = vtanh.pop %v681
        %686 = vrot.lane.b32.xlu0 %v682, 64
        %v687 = vpop.permute.xlu0 %686
        %688 = vrot.lane.b32.xlu0 %v683, 64
        %v689 = vpop.permute.xlu0 %688
        %v692 = vmul.f32 %v667, %v687
        %v693 = vmul.f32 %v669, %v689
        %v694 = vmax.f32 %v588, 0.0
        %v695 = vmax.f32 %v589, 0.0
        %v696 = vpack.c.bf16 %v695, %v694
        %v697 = vld [vmem:[#allocation2 + $0x44] sm:$0xf]
        %v698 = vld [vmem:[#allocation2 + $0x48] sm:$0xf]
        %v699 = vld [vmem:[#allocation2 + $0x4c] sm:$0xf]
        %v700 = vld [vmem:[#allocation2 + $0x50] sm:$0xf]
        %v701 = vmax.f32 %v692, 0.0
        %v702 = vmax.f32 %v693, 0.0
        %v703 = vpack.c.bf16 %v702, %v701
        %v704 = vld [vmem:[#allocation2 + $0x54] sm:$0xf]
        %v705 = vld [vmem:[#allocation2 + $0x58] sm:$0xf]
        %v706 = vld [vmem:[#allocation2 + $0x5c] sm:$0xf]
        %v707 = vld [vmem:[#allocation2 + $0x60] sm:$0xf]
        %709 = vrot.lane.b32.xlu0 %v703, 64
        %v710 = vpop.permute.xlu0 %709
        %v715 = vunpack.c.l.b16 %v704
        %v716 = vunpack.c.l.b16 %v705
        %v717 = vunpack.c.l.b16 %v706
        %v718 = vunpack.c.l.b16 %v707
        %v719 = vpack.c.b16 %v716, %v715
        %v720 = vpack.c.b16 %v718, %v717
        %v724 = vsel %vm335, %v710, 0
        %726 = vmatprep.subr.bf16.mxu0 0
        %727 = vmatpush1.bf16.msra.mxu0 0
        %728 = vmatprep.subr.bf16.mxu0 0
        %729 = vmatpush1.bf16.msra.mxu0 0
        %730 = vmatprep.subr.bf16.mxu0 0
        %731 = vmatpush1.bf16.msra.mxu0 0
        %732 = vmatprep.subr.bf16.mxu0 0
        %733 = vmatpush1.bf16.msra.mxu0 0
        %734 = vmatprep.subr.bf16.mxu0 0
        %735 = vmatpush1.bf16.msra.mxu0 0
        %736 = vmatprep.subr.bf16.mxu0 0
        %737 = vmatpush1.bf16.msra.mxu0 0
        %738 = vmatprep.subr.bf16.mxu0 0
        %739 = vmatpush1.bf16.msra.mxu0 %v720
        %740 = vmatprep.subr.bf16.mxu0 0
        %741 = vmatpush1.bf16.msra.mxu0 %v719
        %742 = vmatprep.subr.bf16.mxu0 0
        %743 = vmatpush2.bf16.msra.mxu0 0
        %744 = vmatprep.subr.bf16.mxu0 0
        %745 = vmatpush2.bf16.msra.mxu0 0
        %746 = vmatprep.subr.bf16.mxu0 0
        %747 = vmatpush2.bf16.msra.mxu0 0
        %748 = vmatprep.subr.bf16.mxu0 0
        %749 = vmatpush2.bf16.msra.mxu0 0
        %750 = vmatprep.subr.bf16.mxu0 0
        %751 = vmatpush2.bf16.msra.mxu0 0
        %752 = vmatprep.subr.bf16.mxu0 0
        %753 = vmatpush2.bf16.msra.mxu0 0
        %754 = vmatprep.subr.bf16.mxu0 0
        %755 = vmatpush2.bf16.msra.mxu0 0
        %756 = vmatprep.subr.bf16.mxu0 0
        %757 = vmatpush2.bf16.msra.mxu0 0
        %758 = vmatprep.mubr.bf16.mxu0 0
        %759 = vmatmul.mubr.bf16.gmra.mxu0 %v724
        %v760 = vpop.f32.mrf.mxu0
        %v761 = vadd.f32 0.0, %v760
        %v762 = vpop.f32.mrf.mxu0
        %v763 = vpop.f32.mrf.mxu0
        %v764 = vadd.f32 0.0, %v763
        %v765 = vpop.f32.mrf.mxu0
        %766 = vdwg.mxu0
        %768 = vrot.lane.b32.xlu0 %v696, 64
        %v769 = vpop.permute.xlu0 %768
        %v774 = vunpack.c.l.b16 %v697
        %v775 = vunpack.c.l.b16 %v698
        %v776 = vunpack.c.l.b16 %v699
        %v777 = vunpack.c.l.b16 %v700
        %v778 = vpack.c.b16 %v775, %v774
        %v779 = vpack.c.b16 %v777, %v776
        %v783 = vsel %vm335, %v769, 0
        %785 = vmatprep.subr.bf16.mxu0 0
        %786 = vmatpush1.bf16.msra.mxu0 0
        %787 = vmatprep.subr.bf16.mxu0 0
        %788 = vmatpush1.bf16.msra.mxu0 0
        %789 = vmatprep.subr.bf16.mxu0 0
        %790 = vmatpush1.bf16.msra.mxu0 0
        %791 = vmatprep.subr.bf16.mxu0 0
        %792 = vmatpush1.bf16.msra.mxu0 0
        %793 = vmatprep.subr.bf16.mxu0 0
        %794 = vmatpush1.bf16.msra.mxu0 0
        %795 = vmatprep.subr.bf16.mxu0 0
        %796 = vmatpush1.bf16.msra.mxu0 0
        %797 = vmatprep.subr.bf16.mxu0 0
        %798 = vmatpush1.bf16.msra.mxu0 %v779
        %799 = vmatprep.subr.bf16.mxu0 0
        %800 = vmatpush1.bf16.msra.mxu0 %v778
        %801 = vmatprep.subr.bf16.mxu0 0
        %802 = vmatpush2.bf16.msra.mxu0 0
        %803 = vmatprep.subr.bf16.mxu0 0
        %804 = vmatpush2.bf16.msra.mxu0 0
        %805 = vmatprep.subr.bf16.mxu0 0
        %806 = vmatpush2.bf16.msra.mxu0 0
        %807 = vmatprep.subr.bf16.mxu0 0
        %808 = vmatpush2.bf16.msra.mxu0 0
        %809 = vmatprep.subr.bf16.mxu0 0
        %810 = vmatpush2.bf16.msra.mxu0 0
        %811 = vmatprep.subr.bf16.mxu0 0
        %812 = vmatpush2.bf16.msra.mxu0 0
        %813 = vmatprep.subr.bf16.mxu0 0
        %814 = vmatpush2.bf16.msra.mxu0 0
        %815 = vmatprep.subr.bf16.mxu0 0
        %816 = vmatpush2.bf16.msra.mxu0 0
        %817 = vmatprep.mubr.bf16.mxu0 0
        %818 = vmatmul.mubr.bf16.gmra.mxu0 %v783
        %v819 = vpop.f32.mrf.mxu0
        %v820 = vadd.f32 %v761, %v819
        %v821 = vpop.f32.mrf.mxu0
        %v822 = vpop.f32.mrf.mxu0
        %v823 = vadd.f32 %v764, %v822
        %v824 = vpop.f32.mrf.mxu0
        %825 = vdwg.mxu0
        %v826 = vmax.bf16 %v187, 0
        %v827 = vmax.bf16 %v188, 0
        %v828 = vld [vmem:[#allocation2 + $0x64] sm:$0x3]
        %v831 = vunpack.c.l.b16 %v826
        %v832 = vunpack.c.l.b16 %v827
        %v833 = vpack.c.b16 %v832, %v831
        %v835 = vsel %vm253, %v833, 0
        %v838 = vsel %vm257, %v828, 0
        %840 = vmatprep.subr.bf16.mxu0 0
        %841 = vmatpush1.bf16.msra.mxu0 0
        %842 = vmatprep.subr.bf16.mxu0 0
        %843 = vmatpush1.bf16.msra.mxu0 0
        %844 = vmatprep.subr.bf16.mxu0 0
        %845 = vmatpush1.bf16.msra.mxu0 0
        %846 = vmatprep.subr.bf16.mxu0 0
        %847 = vmatpush1.bf16.msra.mxu0 0
        %848 = vmatprep.subr.bf16.mxu0 0
        %849 = vmatpush1.bf16.msra.mxu0 0
        %850 = vmatprep.subr.bf16.mxu0 0
        %851 = vmatpush1.bf16.msra.mxu0 0
        %852 = vmatprep.subr.bf16.mxu0 0
        %853 = vmatpush1.bf16.msra.mxu0 0
        %854 = vmatprep.subr.bf16.mxu0 0
        %855 = vmatpush1.bf16.msra.mxu0 %v838
        %856 = vmatprep.subr.bf16.mxu0 0
        %857 = vmatpush2.bf16.msra.mxu0 0
        %858 = vmatprep.subr.bf16.mxu0 0
        %859 = vmatpush2.bf16.msra.mxu0 0
        %860 = vmatprep.subr.bf16.mxu0 0
        %861 = vmatpush2.bf16.msra.mxu0 0
        %862 = vmatprep.subr.bf16.mxu0 0
        %863 = vmatpush2.bf16.msra.mxu0 0
        %864 = vmatprep.subr.bf16.mxu0 0
        %865 = vmatpush2.bf16.msra.mxu0 0
        %866 = vmatprep.subr.bf16.mxu0 0
        %867 = vmatpush2.bf16.msra.mxu0 0
        %868 = vmatprep.subr.bf16.mxu0 0
        %869 = vmatpush2.bf16.msra.mxu0 0
        %870 = vmatprep.subr.bf16.mxu0 0
        %871 = vmatpush2.bf16.msra.mxu0 0
        %872 = vmatprep.mubr.bf16.mxu0 0
        %873 = vmatmul.mubr.bf16.gmra.mxu0 %v835
        %v874 = vpop.f32.mrf.mxu0
        %v875 = vadd.f32 0.0, %v874
        %v876 = vpop.f32.mrf.mxu0
        %v877 = vpop.f32.mrf.mxu0
        %v878 = vadd.f32 0.0, %v877
        %v879 = vpop.f32.mrf.mxu0
        %880 = vdwg.mxu0
        %v881 = vadd.f32 %v820, %v875
        %v882 = vadd.f32 %v823, %v878
        %v883 = vld [vmem:[#allocation2 + $0x68] sm:$0x2]
        %v884 = vunpack.c.l.bf16 %v883
        %v885 = vlaneseq
        %v886 = vshrl.u32 %v885, 7
        %v887 = vsub.s32 2, %v886
        %v888 = vrot.slane %v884, %v887
        %v889 = vadd.f32 %v881, %v888
        %v890 = vadd.f32 %v882, %v888
        %891 = vst [vmem:[%s178] sm:$0xff] %v889
        %892 = vst [vmem:[%s178 + $0x8] sm:$0xff] %v890
        %s893 = sand.u32 %s94, 1
        %s894 = scalar_lea.sflag [#allocation4], %s893
        %s895 = sand.u32 %s94, 1
        %s896 = smul.addr %s895, 16
        %s897 = scalar_lea.vmem [#allocation5], %s896
        // Predicated region
        $region37: #{tpu_custom_call.1} parent=31 // pred_check
          %p898 = pneg %p104
        $region38: #{tpu_custom_call.1} parent=31 // pred_check_branch
          %900 = sbr.rel (%p898) target = $region40
        $region39: #{tpu_custom_call.1} parent=31 // pred_region
          %s902 = ssub.s32 256, 256
          %903 = vsyncadd %s894, %s902
          %s904 = smul.addr %s18, 2
          %s905 = smul.addr %s904, 128
          %s906 = scalar_lea.hbm %s3, %s905
          %s907 = sshll.u32 %s897, 4
          %s908 = int_to_ptr.vmem [resolvable:$true] %s907
          %913 = dma.vmem_to_hbm [thread:$0]  %s908, 256, %s906, %s894, 128, 128, 8
        $region40: #{tpu_custom_call.1} parent=31 // pred_fallthru
          _
      $region32: #{tpu_custom_call.1} parent=5 // pred_fallthru
        _
      %p914 = scmp.le.s32.totalorder 2, %s13
      // Predicated region
      $region41: #{tpu_custom_call.1} parent=5 // pred_check
        %p915 = pneg %p914
      $region42: #{tpu_custom_call.1} parent=5 // pred_check_branch
        %917 = sbr.rel (%p915) target = $region44
      $region43: #{tpu_custom_call.1} parent=5 // pred_region
        %s918 = ssub.s32 %s13, 2
        // Predicated region
        $region45: #{tpu_custom_call.1} parent=43 // pred_check
          %p919 = pneg %p110
        $region46: #{tpu_custom_call.1} parent=43 // pred_check_branch
          %921 = sbr.rel (%p919) target = $region48
        $region47: #{tpu_custom_call.1} parent=43 // pred_region
          %s922 = sand.u32 %s95, 1
          %s923 = scalar_lea.sflag [#allocation4], %s922
          %s924 = sand.u32 %s95, 1
          %s925 = smul.addr %s924, 16
          %s926 = scalar_lea.vmem [#allocation5], %s925
          %927 = dma.done %s923, 256
        $region48: #{tpu_custom_call.1} parent=43 // pred_fallthru
          _
      $region44: #{tpu_custom_call.1} parent=5 // pred_fallthru
        _
    $region6: #{tpu_custom_call.1} parent=1 // loop_footer
      %s17 = sadd.s32 1, %s13
    $region7: #{tpu_custom_call.1} parent=1 // loop_footer_branch
      %12 = sbr.rel target = $region3
    $region8: #{tpu_custom_call.1} parent=1 // loop_exit
      _
    %928 = vsyncpa [#allocation3], 1
    %s929 = scalar_lea.sflag [#allocation3], 1
    %930 = vsyncpa %s929, 1
    %931 = vsyncpa [#allocation4], 1
    %s932 = scalar_lea.sflag [#allocation4], 1
    %933 = vsyncpa %s932, 1

</llo_original>
